<compile_context>
chip_gen: v5e
topology: v5e:2x2
jax: 0.10.0
libtpu: 0.0.40
codegen_flags: <defaults>
</compile_context>

<pallas_src>
import math
import functools

import jax
import jax.numpy as jnp
from jax.experimental import pallas as pl
from jax.experimental.pallas import tpu as pltpu

_HALF_PI = math.pi / 2.0
_LANE = 128


# ---------------------------------------------------------------------------
# Kernel
# ---------------------------------------------------------------------------

def _sinusoid_kernel(*refs, k, width, per_lane_xy, n_valid, padded_total,
                     tile_rows, has_scale, boundary_tile):
    """Write one (tile_rows, k*d_model) slab of the positional-encoding table.

    Slab layout: slab row r holds table rows [r*k, (r+1)*k) concatenated along
    lanes.  Table entry:
        pe[p, j] = sin(a(p) * fa[lane] + b(p) * fb[lane] + offs[lane]) * scale
    const_ref rows (precomputed in the wrapper, O(d_model) work):
        0: fa    (pos/x frequency per lane; 0 on the y-half for 2-D)
        1: fb    (y frequency per lane; all-zero for 1-D)
        2: offs  (phase, plus packing-offset*freq when it can be folded)
        3: subf  (lane -> packing sub-row index; per-lane xy + valid-row mask)
    """
    if has_scale:
        scale_ref, const_ref, out_ref = refs
    else:
        const_ref, out_ref = refs

    i = pl.program_id(0)

    # Per-row slab index as an int column, then exact f32 (rows < 2^24).
    r_i = jax.lax.broadcasted_iota(jnp.int32, (tile_rows, 1), 0) + i * tile_rows
    rk = (r_i * k).astype(jnp.float32)            # first table-row of each slab row

    fa = const_ref[0:1, :]
    fb = const_ref[1:2, :]
    offs = const_ref[2:3, :]

    if width is None:
        # 1-D: position = rk + sub; sub*freq is folded into offs.
        arg = rk * fa + offs
    else:
        w = jnp.float32(width)
        if per_lane_xy:
            # k does not divide width: derive x,y per lane from p = rk + sub.
            subf = const_ref[3:4, :]
            p = rk + subf
            y = jnp.floor(p / w)
            x = p - y * w
            # Guard one-ulp floor-divide errors.
            y = jnp.where(x < 0.0, y - 1.0, jnp.where(x >= w, y + 1.0, y))
            x = jnp.where(x < 0.0, x + w, jnp.where(x >= w, x - w, x))
            arg = x * fa + y * fb + offs
        else:
            # k | width (or k == 1): y is constant across the packed positions,
            # so x,y are cheap per-row columns; sub*freq folded into offs.
            y = jnp.floor(rk / w)
            x = rk - y * w
            y = jnp.where(x < 0.0, y - 1.0, jnp.where(x >= w, y + 1.0, y))
            x = jnp.where(x < 0.0, x + w, jnp.where(x >= w, x - w, x))
            arg = x * fa + y * fb + offs

    pe = jnp.sin(arg)
    if has_scale:
        pe = pe * scale_ref[0, 0]
    pe = pe.astype(out_ref.dtype)

    if n_valid < padded_total:
        # Zero CLS rows / padded rows — only on tiles at/after the boundary.
        subf = const_ref[3:4, :]
        p = rk + subf                              # table-row index of each element
        pe_masked = jnp.where(p < jnp.float32(n_valid), pe, jnp.zeros_like(pe))
        if boundary_tile <= 0:
            out_ref[...] = pe_masked
        else:
            @pl.when(i >= boundary_tile)
            def _():
                out_ref[...] = pe_masked

            @pl.when(i < boundary_tile)
            def _():
                out_ref[...] = pe
    else:
        out_ref[...] = pe


# ---------------------------------------------------------------------------
# Wrapper helpers
# ---------------------------------------------------------------------------

def _cdiv(a, b):
    return -(-a // b)


def _round_up(a, b):
    return _cdiv(a, b) * b


def _pack_factor(d_model):
    """Lane-dense packing factor: k positions per 128-lane slab row."""
    if d_model >= _LANE or (_LANE % d_model) != 0:
        return 1
    return _LANE // d_model


def _const_rows_1d(d_model, k):
    lanes = k * d_model
    c = jnp.arange(lanes, dtype=jnp.int32)
    sub = (c // d_model).astype(jnp.float32)
    j = c % d_model
    pair = ((j // 2) * 2).astype(jnp.float32)
    freq = jnp.exp(pair * (-math.log(10000.0) / d_model))
    phase = (j % 2).astype(jnp.float32) * _HALF_PI
    fa = freq
    fb = jnp.zeros_like(freq)
    offs = sub * fa + phase
    return jnp.stack([fa, fb, offs, sub], axis=0).astype(jnp.float32)   # (4, lanes)


def _const_rows_2d(d_model, k, fold_sub):
    lanes = k * d_model
    d_x = d_model // 2
    c = jnp.arange(lanes, dtype=jnp.int32)
    sub = (c // d_model).astype(jnp.float32)
    j = c % d_model
    is_x = j < d_x
    cj = jnp.where(is_x, j, j - d_x)
    pair = ((cj // 2) * 2).astype(jnp.float32)
    freq = jnp.exp(pair * (-math.log(10000.0) / d_x))
    phase = (cj % 2).astype(jnp.float32) * _HALF_PI
    fa = jnp.where(is_x, freq, 0.0)
    fb = jnp.where(is_x, 0.0, freq)
    offs = (sub * fa if fold_sub else jnp.zeros_like(fa)) + phase
    return jnp.stack([fa, fb, offs, sub], axis=0).astype(jnp.float32)   # (4, lanes)


def _plan_tiles(slab_rows, lane_width, itemsize, tile_rows, sublane):
    """Pick (tile_rows, grid, padded_slab_rows) with tile_rows | padded_slab_rows.

    Out blocks are capped at ~4 MiB (double-buffered 8 MiB fits even v7x's 64 MiB
    VMEM and v5e's 16 MiB default scoped VMEM).  The grid is forced to >= 2 steps
    on non-tiny tables so the "parallel" axis can be sharded across both v7x
    TensorCores.
    """
    aligned = _round_up(max(slab_rows, 1), sublane)
    if tile_rows is None:
        row_bytes = lane_width * itemsize
        budget = 4 * 1024 * 1024
        tile_rows = max(sublane, (budget // row_bytes // sublane) * sublane)
    tile_rows = max(sublane, (int(tile_rows) // sublane) * sublane)

    grid = max(1, _cdiv(aligned, tile_rows))
    if grid == 1 and aligned >= 2 * sublane:
        grid = 2                                   # keep both v7x cores busy
    t = _round_up(_cdiv(aligned, grid), sublane)
    grid = _cdiv(aligned, t)
    padded = grid * t
    return t, grid, padded


def _run_sinusoid(*, d_model, n_valid, total_rows, scale, width=None,
                  tile_rows=None, out_dtype=jnp.float32):
    out_dtype = jnp.dtype(out_dtype)
    sublane = 16 if out_dtype.itemsize == 2 else 8

    k = _pack_factor(d_model)
    per_lane_xy = (width is not None) and (k > 1) and (width % k != 0)
    lanes = k * d_model
    slab_rows = _cdiv(total_rows, k)
    t, grid, padded_slab_rows = _plan_tiles(slab_rows, lanes, out_dtype.itemsize,
                                            tile_rows, sublane)
    padded_total = padded_slab_rows * k

    const = (_const_rows_2d(d_model, k, fold_sub=not per_lane_xy)
             if width is not None else _const_rows_1d(d_model, k))

    has_scale = not (isinstance(scale, (int, float)) and float(scale) == 1.0)
    boundary_tile = (n_valid // k) // t

    kernel = functools.partial(
        _sinusoid_kernel, k=k, width=width, per_lane_xy=per_lane_xy,
        n_valid=n_valid, padded_total=padded_total, tile_rows=t,
        has_scale=has_scale, boundary_tile=boundary_tile)

    in_specs = [pl.BlockSpec((4, lanes), lambda i: (0, 0))]        # const rows (resident)
    args = [const]
    if has_scale:
        in_specs = [pl.BlockSpec((1, 1), lambda i: (0, 0),
                                 memory_space=pltpu.MemorySpace.SMEM)] + in_specs
        args = [jnp.asarray(scale, jnp.float32).reshape(1, 1)] + args

    slab = pl.pallas_call(
        kernel,
        out_shape=jax.ShapeDtypeStruct((padded_slab_rows, lanes), out_dtype),
        grid=(grid,),
        in_specs=in_specs,
        out_specs=pl.BlockSpec((t, lanes), lambda i: (i, 0)),
        compiler_params=pltpu.CompilerParams(
            dimension_semantics=("parallel",),
            vmem_limit_bytes=32 * 1024 * 1024),
    )(*args)

    # Contiguous (padded_slab_rows, k*d_model) -> (padded_total, d_model): free reshape.
    out = slab.reshape(padded_total, d_model)
    if padded_total != total_rows:
        out = out[:total_rows]
    return out


# ---------------------------------------------------------------------------
# Module-equivalent wrapper
# ---------------------------------------------------------------------------

class PositionalEncodingPallas:
    def __init__(self, encoding_type, d_model, max_len=None, height=None,
                 width=None, learnable_scale=False, key=None):
        self.encoding_type = encoding_type
        self.d_model = d_model
        self.max_len = max_len
        self.height = height
        self.width = width

        if encoding_type == 'learned':
            if max_len is None:
                raise ValueError('max_len must be specified for learned positional encoding')
            if key is None:
                key = jax.random.PRNGKey(0)
            self.pos_embedding = jax.random.normal(
                key, (1, max_len + 1, d_model), dtype=jnp.float32)
        elif encoding_type == 'sinusoidal_1d':
            if max_len is None:
                raise ValueError('max_len must be specified for 1D sinusoidal positional encoding')
        elif encoding_type == 'sinusoidal_2d':
            if height is None or width is None:
                raise ValueError('height and width must be specified for 2D sinusoidal encoding')
            if d_model % 4 != 0:
                raise ValueError('d_model must be divisible by 4 for 2D sinusoidal encoding')
        else:
            raise ValueError(f'Unknown encoding type: {encoding_type}')

        if learnable_scale and encoding_type != 'learned':
            self.scale = jnp.ones((1,), jnp.float32)   # learnable parameter (value 1.0)
        else:
            self.scale = 1.0

    def __call__(self, seq_len=None, include_cls_token=False, tile_rows=None,
                 out_dtype=jnp.float32):
        if self.encoding_type == 'learned':
            # Pure slice of the parameter — no copy kernel, no extra HBM traffic.
            pe = self.pos_embedding
            if seq_len is not None:
                return pe[:, :seq_len]
            if not include_cls_token:
                return pe[:, :-1]
            return pe

        if self.encoding_type == 'sinusoidal_1d':
            if seq_len is not None:
                n_valid = min(seq_len, self.max_len)   # torch slice semantics
            else:
                n_valid = self.max_len
            width = None
        else:  # sinusoidal_2d
            n_valid = self.height * self.width
            width = self.width

        total_rows = n_valid + (1 if include_cls_token else 0)   # CLS row fused in-kernel
        out2d = _run_sinusoid(d_model=self.d_model, n_valid=n_valid,
                              total_rows=total_rows, scale=self.scale,
                              width=width, tile_rows=tile_rows,
                              out_dtype=out_dtype)
        return out2d[None, :, :]


# ---------------------------------------------------------------------------
# Pure-JAX references (sanity checking)
# ---------------------------------------------------------------------------

def _ref_sin1d(max_len, d_model):
    pe = jnp.zeros((max_len, d_model), jnp.float32)
    position = jnp.arange(max_len, dtype=jnp.float32)[:, None]
    div_term = jnp.exp(jnp.arange(0, d_model, 2, dtype=jnp.float32)
                       * (-math.log(10000.0) / d_model))
    pe = pe.at[:, 0::2].set(jnp.sin(position * div_term))
    pe = pe.at[:, 1::2].set(jnp.cos(position * div_term))
    return pe[None]


def _ref_sin2d(height, width, d_model):
    pe = jnp.zeros((height * width, d_model), jnp.float32)
    y_pos = jnp.repeat(jnp.arange(height), width).astype(jnp.float32)[:, None]
    x_pos = jnp.tile(jnp.arange(width), height).astype(jnp.float32)[:, None]
    d_x = d_model // 2
    div_x = jnp.exp(jnp.arange(0, d_x, 2, dtype=jnp.float32) * (-math.log(10000.0) / d_x))
    pe = pe.at[:, 0:d_x:2].set(jnp.sin(x_pos * div_x))
    pe = pe.at[:, 1:d_x:2].set(jnp.cos(x_pos * div_x))
    div_y = jnp.exp(jnp.arange(0, d_x, 2, dtype=jnp.float32) * (-math.log(10000.0) / d_x))
    pe = pe.at[:, d_x::2].set(jnp.sin(y_pos * div_y))
    pe = pe.at[:, d_x + 1::2].set(jnp.cos(y_pos * div_y))
    return pe[None]


if __name__ == "__main__":
    key = jax.random.PRNGKey(0)
    d_model, max_len, height, width = 32, 8, 4, 4

    # --- learned (pure slice, no kernel) ---
    mod_l = PositionalEncodingPallas('learned', d_model, max_len=max_len, key=key)
    out_l = jax.block_until_ready(mod_l(seq_len=max_len))
    assert out_l.shape == (1, max_len, d_model)
    assert jnp.allclose(out_l, mod_l.pos_embedding[:, :max_len], atol=1e-6)

    # --- sinusoidal_1d, lane-dense packed path (k = 128 / 32 = 4), learnable scale ---
    mod_1d = PositionalEncodingPallas('sinusoidal_1d', d_model, max_len=max_len,
                                      learnable_scale=True)
    out_1d = jax.block_until_ready(mod_1d(seq_len=max_len))
    ref_1d = _ref_sin1d(max_len, d_model)
    assert out_1d.shape == (1, max_len, d_model)
    assert jnp.allclose(out_1d, ref_1d, atol=1e-5), "1D sinusoidal mismatch"

    # --- sinusoidal_1d with fused CLS zero row (packed path stays alive) ---
    out_1dc = jax.block_until_ready(mod_1d(seq_len=max_len, include_cls_token=True))
    ref_1dc = jnp.concatenate([ref_1d, jnp.zeros((1, 1, d_model), jnp.float32)], axis=1)
    assert out_1dc.shape == (1, max_len + 1, d_model)
    assert jnp.allclose(out_1dc, ref_1dc, atol=1e-5), "1D sinusoidal (+CLS) mismatch"

    # --- sinusoidal_2d, packed path with k | width (non-learnable scale -> no SMEM op) ---
    mod_2d = PositionalEncodingPallas('sinusoidal_2d', d_model, height=height, width=width)
    out_2d = jax.block_until_ready(mod_2d())
    ref_2d = _ref_sin2d(height, width, d_model)
    assert out_2d.shape == (1, height * width, d_model)
    assert jnp.allclose(out_2d, ref_2d, atol=1e-5), "2D sinusoidal mismatch"

    # --- sinusoidal_2d with fused CLS row (packed path stays alive) ---
    out_2dc = jax.block_until_ready(mod_2d(include_cls_token=True))
    ref_2dc = jnp.concatenate([ref_2d, jnp.zeros((1, 1, d_model), jnp.float32)], axis=1)
    assert out_2dc.shape == (1, height * width + 1, d_model)
    assert jnp.allclose(out_2dc, ref_2dc, atol=1e-5), "2D sinusoidal (+CLS) mismatch"

    # --- sinusoidal_2d with width % k != 0 (per-lane x/y path, packing kept) ---
    h2, w2 = 3, 5
    mod_2db = PositionalEncodingPallas('sinusoidal_2d', d_model, height=h2, width=w2)
    out_2db = jax.block_until_ready(mod_2db())
    ref_2db = _ref_sin2d(h2, w2, d_model)
    assert out_2db.shape == (1, h2 * w2, d_model)
    assert jnp.allclose(out_2db, ref_2db, atol=1e-5), "2D per-lane-xy sinusoidal mismatch"

    # --- moderate 1D table exercising the row-tiled grid (grid > 1) ---
    D2, L2 = 128, 1024
    mod_big = PositionalEncodingPallas('sinusoidal_1d', D2, max_len=L2)
    out_big = jax.block_until_ready(mod_big(seq_len=L2, tile_rows=256))
    ref_big = _ref_sin1d(L2, D2)
    assert out_big.shape == (1, L2, D2)
    assert jnp.allclose(out_big, ref_big, atol=1e-3), "tiled 1D sinusoidal mismatch"
    # auto tile planner (forces grid >= 2 for the v7x cores)
    out_big2 = jax.block_until_ready(mod_big(seq_len=L2))
    assert jnp.allclose(out_big2, ref_big, atol=1e-3), "auto-tiled 1D sinusoidal mismatch"

    # --- bf16 output option (half the HBM writeback) ---
    mod_bf = PositionalEncodingPallas('sinusoidal_1d', 64, max_len=64)
    out_bf = jax.block_until_ready(mod_bf(seq_len=64, out_dtype=jnp.bfloat16))
    ref_bf = _ref_sin1d(64, 64)
    assert out_bf.dtype == jnp.bfloat16 and out_bf.shape == (1, 64, 64)
    assert jnp.allclose(out_bf.astype(jnp.float32), ref_bf, atol=2e-2), "bf16 sinusoidal mismatch"

    print("KERNEL_OK")
</pallas_src>

<mosaic_0001>
module attributes {stable_mosaic.version = 11 : i64} {
  func.func @_sinusoid_kernel(%arg0: i32, %arg1: memref<1x1xf32, #tpu.memory_space<smem>>, %arg2: memref<4x128xf32, #tpu.memory_space<vmem>>, %arg3: memref<8x128xf32, #tpu.memory_space<vmem>>) attributes {dimension_semantics = [#tpu.dimension_semantics<parallel>], iteration_bounds = array<i64: 1>, scalar_prefetch = 0 : i64, scratch_operands = 0 : i64, tpu.core_type = #tpu.core_type<tc>, window_params = [{transform_indices = @transform_0, window_bounds = array<i64: 1, 1>}, {pipeline_mode = #tpu.pipeline_mode<synchronous>, transform_indices = @transform_1, window_bounds = array<i64: 4, 128>}, {transform_indices = @transform_2, window_bounds = array<i64: 8, 128>}]} {
    %0 = tpu.iota {dimensions = array<i32: 0>} : vector<8x1xi32>
    %c8_i32 = arith.constant 8 : i32
    %1 = arith.muli %arg0, %c8_i32 : i32
    %2 = vector.broadcast %1 : i32 to vector<8x1xi32>
    %3 = arith.addi %0, %2 : vector<8x1xi32>
    %c4_i32 = arith.constant 4 : i32
    %4 = vector.broadcast %c4_i32 : i32 to vector<8x1xi32>
    %5 = arith.muli %3, %4 : vector<8x1xi32>
    %6 = arith.sitofp %5 : vector<8x1xi32> to vector<8x1xf32>
    %c0 = arith.constant 0 : index
    %c0_0 = arith.constant 0 : index
    %7 = vector.load %arg2[%c0, %c0_0] : memref<4x128xf32, #tpu.memory_space<vmem>>, vector<1x128xf32>
    %c2 = arith.constant 2 : index
    %c0_1 = arith.constant 0 : index
    %8 = vector.load %arg2[%c2, %c0_1] : memref<4x128xf32, #tpu.memory_space<vmem>>, vector<1x128xf32>
    %9 = vector.broadcast %6 : vector<8x1xf32> to vector<8x128xf32>
    %10 = vector.broadcast %7 : vector<1x128xf32> to vector<8x128xf32>
    %11 = arith.mulf %9, %10 : vector<8x128xf32>
    %12 = vector.broadcast %8 : vector<1x128xf32> to vector<8x128xf32>
    %13 = arith.addf %11, %12 : vector<8x128xf32>
    %14 = math.sin %13 : vector<8x128xf32>
    %c0_2 = arith.constant 0 : index
    %c0_3 = arith.constant 0 : index
    %15 = memref.load %arg1[%c0_2, %c0_3] : memref<1x1xf32, #tpu.memory_space<smem>>
    %16 = vector.broadcast %15 : f32 to vector<8x128xf32>
    %17 = arith.mulf %14, %16 : vector<8x128xf32>
    %c3 = arith.constant 3 : index
    %c0_4 = arith.constant 0 : index
    %18 = vector.load %arg2[%c3, %c0_4] : memref<4x128xf32, #tpu.memory_space<vmem>>, vector<1x128xf32>
    %19 = vector.broadcast %6 : vector<8x1xf32> to vector<8x128xf32>
    %20 = vector.broadcast %18 : vector<1x128xf32> to vector<8x128xf32>
    %21 = arith.addf %19, %20 : vector<8x128xf32>
    %cst = arith.constant 8.000000e+00 : f32
    %22 = vector.broadcast %cst : f32 to vector<8x128xf32>
    %23 = arith.cmpf olt, %21, %22 : vector<8x128xf32>
    %cst_5 = arith.constant 0.000000e+00 : f32
    %24 = vector.broadcast %cst_5 : f32 to vector<8x128xf32>
    %25 = arith.select %23, %17, %24 : vector<8x128xi1>, vector<8x128xf32>
    %c0_6 = arith.constant 0 : index
    %c0_7 = arith.constant 0 : index
    %26 = vector.load %arg3[%c0_6, %c0_7] : memref<8x128xf32, #tpu.memory_space<vmem>>, vector<8x128xf32>
    tpu.vector_store %arg3[%c0_6, %c0_7], %25 {strides = array<i32>} : memref<8x128xf32, #tpu.memory_space<vmem>>, vector<8x128xf32>,
    return
  }
  func.func @transform_0(%arg0: i32) -> (i32, i32) {
    %c0_i32 = arith.constant 0 : i32
    %c0_i32_0 = arith.constant 0 : i32
    %c0_i32_1 = arith.constant 0 : i32
    return %c0_i32, %c0_i32_0 : i32, i32
  }
  func.func @transform_1(%arg0: i32) -> (i32, i32) {
    %c0_i32 = arith.constant 0 : i32
    %c0_i32_0 = arith.constant 0 : i32
    %c0_i32_1 = arith.constant 0 : i32
    return %c0_i32, %c0_i32_0 : i32, i32
  }
  func.func @transform_2(%arg0: i32) -> (i32, i32) {
    %c0_i32 = arith.constant 0 : i32
    %c0_i32_0 = arith.constant 0 : i32
    return %arg0, %c0_i32 : i32, i32
  }
}

</mosaic_0001>

<llo_original>
// kernel: tpu_custom_call.1
$region0: #{tpu_custom_call.1}
  #allocation0 [shape = 'u32[]', space=smem, size = 0x4, offset = 0x4, fixed_abs, tag = 'smem constant byte address 0x4 - core index']
  #allocation1 [shape = 'u32[72,128]{1,0:T(1,128)}', space=vmem, size = 0x9000, scoped, tag = 'internal scratch']
  #allocation2 [shape = 'f32[1,1]{1,0:T(1,128)S(6)}', space=smem, size = 0x200, scoped, tag = 'scoped memory for tpu_custom_call.1']
  %s0 = inlined_call_operand.<no memory space> [shape: f32[1,1], index: 0, kind: input, shape index: {}]
  %s1 = inlined_call_operand.hbm [shape: f32[4,128], index: 1, kind: input, shape index: {}]
  %s2 = inlined_call_operand.hbm [shape: f32[8,128], index: 2, kind: output, shape index: {}]
  %s3 = sld [smem:[#allocation0]]
  $region22: #{tpu_custom_call.1} parent=0
    _
  %s5 = ssub.s32 1, %s3
  %s6 = scalar_select 0, %s5, %s3
  %7 = sst [smem:[#allocation2]] %s0
  $region1: #{tpu_custom_call.1} parent=0
    #allocation3 [shape = 'u8[2048]{0}', space=vmem, size = 0x800, scoped, tag = 'input window, operand 1, single buffered']
    #allocation4 [shape = 's32[1]{0}', space=sflag, size = 0x4, scoped, tag = 'scoped memory for tpu_custom_call.1']
    #allocation5 [shape = 's32[1]{0}', space=sflag, size = 0x4, scoped, tag = 'scoped memory for tpu_custom_call.1']
    #allocation6 [shape = 'u8[4096]{0}', space=vmem, size = 0x1000, scoped, tag = 'output window, operand 0, single buffered']
    %8 = vsyncpa [#allocation4], 0
    %9 = vsyncpa [#allocation5], 0
    // Predicated region
    $region2: #{tpu_custom_call.1} parent=1 // pred_check
      _
    $region3: #{tpu_custom_call.1} parent=1 // pred_check_branch
      %11 = sbr.rel (0) target = $region5
    $region4: #{tpu_custom_call.1} parent=1 // pred_region
      _
    $region5: #{tpu_custom_call.1} parent=1 // pred_fallthru
      _
    // Predicated region
    $region6: #{tpu_custom_call.1} parent=1 // pred_check
      _
    $region7: #{tpu_custom_call.1} parent=1 // pred_check_branch
      %13 = sbr.rel (0) target = $region9
    $region8: #{tpu_custom_call.1} parent=1 // pred_region
      %15 = vsyncadd [#allocation4], 0
      %s17 = sshll.u32 %s1, 4
      %s18 = int_to_ptr.hbm [resolvable:$true] %s17
      %s19 = sshll.u32 [#allocation3], 4
      %s20 = int_to_ptr.vmem [resolvable:$true] %s19
      %22 = dma.hbm_to_vmem [thread:$0]  %s18, 64, %s20, [#allocation4]
    $region9: #{tpu_custom_call.1} parent=1 // pred_fallthru
      _
    // Predicated region
    $region10: #{tpu_custom_call.1} parent=1 // pred_check
      _
    $region11: #{tpu_custom_call.1} parent=1 // pred_check_branch
      %24 = sbr.rel (0) target = $region13
    $region12: #{tpu_custom_call.1} parent=1 // pred_region
      %26 = dma.done [#allocation4], 64
    $region13: #{tpu_custom_call.1} parent=1 // pred_fallthru
      _
    %v27 = vlaneseq
    %v28 = vshrl.u32 %v27, 7
    %s29 = smul.u32 0, 8
    %v30 = vstv %s29
    %v31 = vadd.s32 %v28, %v30
    %v32 = vmul.u32 %v31, 4
    %v33 = vcvt.s32.f32 %v32
    %v34 = vld [vmem:[#allocation3] sm:$0x1]
    %v35 = vld [vmem:[#allocation3 + $0x2] sm:$0x1]
    %v36 = vperm.slane %v34, 0
    %v37 = vmul.f32 %v33, %v36
    %v38 = vperm.slane %v35, 0
    %v39 = vadd.f32 %v37, %v38
    %v40 = vand.u32 2147483647, %v39
    %vm41 = vcmp.le.f32.partialorder %v40, 0.7853982
    %vm42 = vcmp.lt.s32.totalorder %v39, 0
    %v43 = vand.u32 %v39, 2139095040
    %v44 = vshrl.u32 %v43, 23
    %v45 = vsub.s32 %v44, 127
    %v46 = vand.u32 2147483647, %v39
    %v47 = vand.u32 %v46, 8388607
    %v48 = vor.u32 %v47, 8388608
    %v49 = vsub.s32 0, %v48
    %v50 = vadd.s32 %v45, 1
    %vm51 = vcmp.gt.s32.totalorder %v50, 0
    %v52 = vsel %vm51, %v50, 0
    %v53 = vshrl.u32 %v52, 5
    %v54 = vand.u32 %v52, 31
    %v55 = vsub.s32 32, %v54
    %v56 = vshrl.u32 683565275, %v55
    %v57 = vshll.u32 683565275, %v54
    %v58 = vshrl.u32 2475754826, %v55
    %v59 = vor.u32 %v57, %v58
    %v60 = vshll.u32 2475754826, %v54
    %v61 = vshrl.u32 2131351028, %v55
    %v62 = vor.u32 %v60, %v61
    %v63 = vshll.u32 2131351028, %v54
    %v64 = vshrl.u32 2102212464, %v55
    %v65 = vor.u32 %v63, %v64
    %v66 = vshll.u32 2102212464, %v54
    %v67 = vshrl.u32 920167782, %v55
    %v68 = vor.u32 %v66, %v67
    %v69 = vshll.u32 920167782, %v54
    %v70 = vshrl.u32 1326507024, %v55
    %v71 = vor.u32 %v69, %v70
    %vm72 = vcmp.lt.s32.totalorder %v53, 1
    %vm73 = vcmp.lt.s32.totalorder %v53, 2
    %vm74 = vcmp.lt.s32.totalorder %v53, 3
    %vm75 = vcmp.lt.s32.totalorder %v53, 4
    %v76 = vsel %vm72, %v56, %v59
    %v77 = vsel %vm75, %v65, 2102212464
    %v78 = vsel %vm74, %v62, %v77
    %v79 = vsel %vm73, %v76, %v78
    %v80 = vsel %vm72, %v59, %v62
    %v81 = vsel %vm75, %v68, 920167782
    %v82 = vsel %vm74, %v65, %v81
    %v83 = vsel %vm73, %v80, %v82
    %v84 = vsel %vm72, %v62, %v65
    %v85 = vsel %vm75, %v71, 1326507024
    %v86 = vsel %vm74, %v68, %v85
    %v87 = vsel %vm73, %v84, %v86
    %v88 = vshll.u32 %v48, 8
    %v89 = vand.u32 %v88, 65535
    %v90 = vshrl.u32 %v88, 16
    %v91 = vand.u32 %v87, 65535
    %v92 = vshrl.u32 %v87, 16
    %v93 = vmul.u32 %v89, %v91
    %v94 = vmul.u32 %v89, %v92
    %v95 = vmul.u32 %v90, %v91
    %v96 = vmul.u32 %v90, %v92
    %v97 = vshll.u32 %v94, 16
    %v98 = vshrl.u32 %v94, 16
    %v99 = vshll.u32 %v95, 16
    %v100 = vshrl.u32 %v95, 16
    %vm101 = vc.u32 %v93, %v97
    %v102 = vsel %vm101, 1, 0
    %v103 = vadd.s32 %v93, %v97
    %v104 = vadd.s32 %v96, %v102
    %vm105 = vc.u32 %v103, %v99
    %v106 = vsel %vm105, 1, 0
    %v107 = vadd.s32 %v103, %v99
    %v108 = vadd.s32 %v104, %v106
    %v109 = vadd.s32 %v108, %v98
    %v110 = vadd.s32 %v109, %v100
    %v111 = vand.u32 %v88, 65535
    %v112 = vshrl.u32 %v88, 16
    %v113 = vand.u32 %v83, 65535
    %v114 = vshrl.u32 %v83, 16
    %v115 = vmul.u32 %v111, %v113
    %v116 = vmul.u32 %v111, %v114
    %v117 = vmul.u32 %v112, %v113
    %v118 = vmul.u32 %v112, %v114
    %v119 = vshll.u32 %v116, 16
    %v120 = vshrl.u32 %v116, 16
    %v121 = vshll.u32 %v117, 16
    %v122 = vshrl.u32 %v117, 16
    %vm123 = vc.u32 %v115, %v119
    %v124 = vsel %vm123, 1, 0
    %v125 = vadd.s32 %v115, %v119
    %v126 = vadd.s32 %v118, %v124
    %vm127 = vc.u32 %v125, %v121
    %v128 = vsel %vm127, 1, 0
    %v129 = vadd.s32 %v125, %v121
    %v130 = vadd.s32 %v126, %v128
    %v131 = vadd.s32 %v130, %v120
    %v132 = vadd.s32 %v131, %v122
    %v133 = vmul.u32 %v88, %v79
    %v134 = vadd.s32 %v110, %v129
    %vm135 = vc.u32 %v110, %v129
    %v136 = vadd.s32 %v132, 1
    %v137 = vsel %vm135, %v136, %v132
    %v138 = vadd.s32 %v133, %v137
    %v139 = vadd.s32 %v138, 536870912
    %v140 = vshrl.u32 %v139, 30
    %v141 = vshll.u32 %v140, 30
    %v142 = vsub.s32 %v138, %v141
    %vm143 = vcmp.lt.s32.totalorder %v142, 0
    %v144 = vsub.s32 0, %v142
    %v145 = vsel %vm143, %v144, %v142
    %v146 = vclz %v145
    %v147 = vsub.s32 %v146, 2
    %vm148 = vcmp.gt.s32.totalorder 0, %v147
    %v149 = vsel %vm148, 0, %v147
    %v150 = vsub.s32 32, %v149
    %v151 = vshll.u32 %v142, %v149
    %v152 = vshrl.u32 %v134, %v150
    %v153 = vor.u32 %v151, %v152
    %v154 = vsub.s32 4294967266, %v149
    %v155 = vadd.s32 %v154, 127
    %v156 = vshll.u32 %v155, 23
    %v157 = vor.u32 4788187, %v156
    %v158 = vand.u32 2147483647, %v157
    %v160 = vcvt.s32.f32 %v153
    %v161 = vmul.f32 %v160, %v158
    %v162 = vxor.u32 %v161, 2147483648
    %v163 = vsel %vm42, %v162, %v161
    %v164 = vsub.s32 4, %v140
    %v165 = vsel %vm42, %v164, %v140
    %v166 = vsel %vm41, %v39, %v163
    %v167 = vsel %vm41, 0, %v165
    %v168 = vmul.f32 %v166, %v166
    %v169 = vmul.f32 %v168, -0.001358992
    %v170 = vadd.f32 %v169, 0.041655596
    %v171 = vmul.f32 %v168, %v170
    %v172 = vadd.f32 %v171, -0.4999988
    %v173 = vmul.f32 %v168, %v172
    %v174 = vadd.f32 1.0, %v173
    %v175 = vmul.f32 %v166, %v166
    %v176 = vmul.f32 %v175, -0.00019511016
    %v177 = vadd.f32 %v176, 0.008332121
    %v178 = vmul.f32 %v175, %v177
    %v179 = vadd.f32 %v178, -0.16666654
    %v180 = vmul.f32 %v175, %v179
    %v181 = vadd.f32 %v180, 1.0
    %v182 = vmul.f32 %v181, %v166
    %vm183 = vweird.f32 %v39
    %v184 = vadd.s32 %v167, 3
    %v185 = vand.u32 %v184, 3
    %vm186 = vcmp.lt.s32.totalorder %v185, 2
    %vm187 = vcmp.eq.s32.totalorder %v185, 0
    %v188 = vxor.u32 %v182, 2147483648
    %v189 = vsel %vm187, %v174, %v188
    %vm190 = vcmp.eq.s32.totalorder %v185, 2
    %v191 = vxor.u32 %v174, 2147483648
    %v192 = vsel %vm190, %v191, %v182
    %v193 = vsel %vm186, %v189, %v192
    %v194 = vsel %vm183, nan, %v193
    %s195 = sld [smem:[#allocation2]]
    %v196 = vstv %s195
    %v197 = vmul.f32 %v194, %v196
    %v198 = vld [vmem:[#allocation3 + $0x3] sm:$0x1]
    %v199 = vperm.slane %v198, 0
    %v200 = vadd.f32 %v33, %v199
    %vm201 = vcmp.lt.f32.partialorder %v200, 8.0
    %v202 = vsel %vm201, %v197, 0.0
    %203 = vst [vmem:[#allocation6] sm:$0xff] %v202
    // Predicated region
    $region14: #{tpu_custom_call.1} parent=1 // pred_check
      _
    $region15: #{tpu_custom_call.1} parent=1 // pred_check_branch
      %205 = sbr.rel (0) target = $region17
    $region16: #{tpu_custom_call.1} parent=1 // pred_region
      %207 = vsyncadd [#allocation5], 0
      %s209 = sshll.u32 [#allocation6], 4
      %s210 = int_to_ptr.vmem [resolvable:$true] %s209
      %s211 = sshll.u32 %s2, 4
      %s212 = int_to_ptr.hbm [resolvable:$true] %s211
      %214 = dma.vmem_to_hbm [thread:$0]  %s210, 128, %s212, [#allocation5]
    $region17: #{tpu_custom_call.1} parent=1 // pred_fallthru
      _
    // Predicated region
    $region18: #{tpu_custom_call.1} parent=1 // pred_check
      _
    $region19: #{tpu_custom_call.1} parent=1 // pred_check_branch
      %216 = sbr.rel (0) target = $region21
    $region20: #{tpu_custom_call.1} parent=1 // pred_region
      %218 = dma.done [#allocation5], 128
    $region21: #{tpu_custom_call.1} parent=1 // pred_fallthru
      _
    %219 = vsyncpa [#allocation4], 1
    %220 = vsyncpa [#allocation5], 1

</llo_original>
